<compile_context>
chip_gen: v5e
topology: v5e:2x2
jax: 0.10.0
libtpu: 0.0.40
codegen_flags: <defaults>
</compile_context>

<pallas_src>
import jax
import jax.numpy as jnp
from jax.experimental import pallas as pl
from jax.experimental.pallas import tpu as pltpu


def _round_up(x, m):
    return ((x + m - 1) // m) * m


def _vmem_limit_bytes():
    """~85% of physical VMEM, capped at 100 MiB (~100 MiB v5e/v6e, ~54 MiB v7x)."""
    try:
        cap = int(pltpu.get_tpu_info().vmem_capacity_bytes)
    except Exception:
        cap = 64 * 1024 * 1024
    return min(int(cap * 0.85), 100 * 1024 * 1024)


# ------------------------------ Pallas kernels -------------------------------
def _gcn_layer1_kernel(aq_ref, s_ref, xw1_ref, b1_ref, w2_ref, o_ref):
    """One A_hat row panel: o = relu(s * (Aq @ XW1) + b1) @ W2   (bf16 out)."""
    a = aq_ref[...].astype(jnp.bfloat16)                       # int8 -> bf16 (VPU)
    acc = jnp.dot(a, xw1_ref[...], preferred_element_type=jnp.float32)
    h = jnp.maximum(acc * s_ref[...] + b1_ref[...], 0.0)       # f32 epilogue
    o_ref[...] = jnp.dot(h.astype(jnp.bfloat16), w2_ref[...],
                         preferred_element_type=jnp.float32).astype(o_ref.dtype)


def _gcn_layer2_kernel(aq_ref, s_ref, hw2_ref, b2_ref, o_ref):
    """One A_hat row panel: o = s * (Aq @ HW2) + b2   (f32 out)."""
    a = aq_ref[...].astype(jnp.bfloat16)
    acc = jnp.dot(a, hw2_ref[...], preferred_element_type=jnp.float32)
    o_ref[...] = acc * s_ref[...] + b2_ref[...]


def _resident_spec(shape, single_buffer):
    """Grid-invariant operand: single-buffer it (double-buffering a block fetched
    exactly once only wastes VMEM)."""
    if single_buffer:
        return pl.BlockSpec(shape, lambda m: (0,) * len(shape),
                            pipeline_mode=pl.Buffered(1))
    return pl.BlockSpec(shape, lambda m: (0,) * len(shape))


# ------------------------------ host wrapper ---------------------------------
def gcn_pallas(a_hat, x, w1, b1, w2, b2, *, tm=256):
    """relu(A_hat @ (x @ w1) + b1) -> A_hat @ (h @ w2) + b2, two row-panel Pallas passes.

    tm: desired row-panel size; sweep 256 (default, fits v7x's 64 MiB) up to 512
        on v5e/v6e for mid-size graphs.
    """
    n = x.shape[0]
    hid = w1.shape[1]
    fout = w2.shape[1]

    # Lane-dense padding; pad N only to 128 so tiny graphs stay tiny.
    n_pad = _round_up(n, 128)
    hid_pad = _round_up(hid, 128)
    fout_pad = _round_up(fout, 128)
    tm = max(128, (min(tm, n_pad) // 128) * 128)
    while n_pad % tm:                      # keep tm a (128-multiple) divisor of n_pad
        tm -= 128
    num_m = n_pad // tm

    # Hoisted feature transform: XW1 in plain XLA (f32), passed as resident bf16.
    xw1 = x.astype(jnp.float32) @ w1.astype(jnp.float32)
    xw1_p = jnp.zeros((n_pad, hid_pad), jnp.bfloat16).at[:n, :hid].set(xw1.astype(jnp.bfloat16))
    w2_p = jnp.zeros((hid_pad, fout_pad), jnp.bfloat16).at[:hid, :fout].set(w2.astype(jnp.bfloat16))
    b1_p = jnp.zeros((1, hid_pad), jnp.float32).at[0, :hid].set(b1)
    b2_p = jnp.zeros((1, fout_pad), jnp.float32).at[0, :fout].set(b2)

    a_pad = jnp.zeros((n_pad, n_pad), jnp.float32).at[:n, :n].set(a_hat.astype(jnp.float32))

    cparams = pltpu.CompilerParams(
        dimension_semantics=("parallel",),      # independent row panels (2 TCs on v7x)
        vmem_limit_bytes=_vmem_limit_bytes())

    def forward(quantize_a, single_buffer):
        if quantize_a:
            # int8 A_hat + per-row f32 scale: halves the dominant HBM stream; scale is
            # applied in the f32 epilogue so the MXU matmul stays bf16 on all gens.
            row_max = jnp.max(a_pad, axis=1, keepdims=True)
            s_p = jnp.maximum(row_max, 1e-30) / 127.0
            a_q = jnp.round(a_pad / s_p).astype(jnp.int8)
        else:
            s_p = jnp.ones((n_pad, 1), jnp.float32)
            a_q = a_pad.astype(jnp.bfloat16)

        a_spec = pl.BlockSpec((tm, n_pad), lambda m: (m, 0))        # streamed A panel
        s_spec = pl.BlockSpec((tm, 1), lambda m: (m, 0))            # per-row scale
        o_spec = pl.BlockSpec((tm, fout_pad), lambda m: (m, 0))     # streamed output panel

        # ---- layer 1 (+ folded W2): hw2 = relu(A @ XW1 + b1) @ W2 ----
        hw2 = pl.pallas_call(
            _gcn_layer1_kernel,
            out_shape=jax.ShapeDtypeStruct((n_pad, fout_pad), jnp.bfloat16),
            grid_spec=pltpu.PrefetchScalarGridSpec(
                num_scalar_prefetch=0, grid=(num_m,),
                in_specs=[a_spec, s_spec,
                          _resident_spec((n_pad, hid_pad), single_buffer),     # XW1
                          _resident_spec((1, hid_pad), single_buffer),         # b1
                          _resident_spec((hid_pad, fout_pad), single_buffer)], # W2
                out_specs=o_spec),
            compiler_params=cparams,
        )(a_q, s_p, xw1_p, b1_p, w2_p)

        # ---- layer 2: out = A @ hw2 + b2 ----
        out = pl.pallas_call(
            _gcn_layer2_kernel,
            out_shape=jax.ShapeDtypeStruct((n_pad, fout_pad), jnp.float32),
            grid_spec=pltpu.PrefetchScalarGridSpec(
                num_scalar_prefetch=0, grid=(num_m,),
                in_specs=[a_spec, s_spec,
                          _resident_spec((n_pad, fout_pad), single_buffer),    # hw2
                          _resident_spec((1, fout_pad), single_buffer)],       # b2
                out_specs=o_spec),
            compiler_params=cparams,
        )(a_q, s_p, hw2, b2_p)

        out = out[:n, :fout]
        out.block_until_ready()   # surface any deferred compile/runtime error here
        return out

    try:
        return forward(quantize_a=True, single_buffer=True)
    except Exception:
        # Conservative fallback (bf16 A, default double-buffering) in case the int8
        # path or pl.Buffered(1) is unsupported by the local jax/Mosaic build.
        return forward(quantize_a=False, single_buffer=False)


# ------------------------------- glue (JAX) ----------------------------------
def normalized_adjacency(edge_index, num_nodes):
    """Dense D^-1/2 (A + I) D^-1/2 from edge_index [2, E] (src -> dst), PyG gcn_norm parity."""
    src = edge_index[0]
    dst = edge_index[1]
    # scatter-ADD so duplicate edges contribute multiple times (PyG semantics)
    adj = jnp.zeros((num_nodes, num_nodes), jnp.float32).at[dst, src].add(1.0)
    # add_remaining_self_loops: keep existing self-loop weight, add 1.0 only where missing
    diag = jnp.diagonal(adj)
    idx = jnp.arange(num_nodes)
    adj = adj.at[idx, idx].set(jnp.where(diag > 0.0, diag, 1.0))
    deg = adj.sum(axis=1)                                   # in-degree incl. self loops (>= 1)
    d_inv_sqrt = jax.lax.rsqrt(deg)
    return adj * d_inv_sqrt[:, None] * d_inv_sqrt[None, :]


def glorot(key, fan_in, fan_out):
    limit = jnp.sqrt(6.0 / (fan_in + fan_out))
    return jax.random.uniform(key, (fan_in, fan_out), jnp.float32, -limit, limit)


def init_gcn_params(key, input_dim, hidden_dim, output_dim):
    k1, k2 = jax.random.split(key)
    return {
        "w1": glorot(k1, input_dim, hidden_dim),
        "b1": jnp.zeros((hidden_dim,), jnp.float32),
        "w2": glorot(k2, hidden_dim, output_dim),
        "b2": jnp.zeros((output_dim,), jnp.float32),
    }


def gcn_forward(params, x, edge_index):
    """x = relu(conv1(x, edge_index)); return conv2(x, edge_index)"""
    n = x.shape[0]
    a_hat = normalized_adjacency(edge_index, n)
    return gcn_pallas(a_hat, x,
                      params["w1"], params["b1"],
                      params["w2"], params["b2"])


# --------------------------------- main ---------------------------------------
if __name__ == "__main__":
    key = jax.random.PRNGKey(0)
    k_x, k_e, k_p = jax.random.split(key, 3)

    num_nodes = 8
    num_edges = 16
    input_dim, hidden_dim, output_dim = 16, 32, 8

    x = jax.random.normal(k_x, (num_nodes, input_dim), jnp.float32)
    edge_index = jax.random.randint(k_e, (2, num_edges), 0, num_nodes, jnp.int32)

    params = init_gcn_params(k_p, input_dim, hidden_dim, output_dim)

    out = gcn_forward(params, x, edge_index)
    jax.block_until_ready(out)

    # Pure-JAX f32 reference; tolerance covers bf16 operands + int8 per-row A quant.
    a_hat = normalized_adjacency(edge_index, num_nodes)
    h_ref = jnp.maximum(a_hat @ (x @ params["w1"]) + params["b1"], 0.0)
    ref = a_hat @ (h_ref @ params["w2"]) + params["b2"]

    assert out.shape == (num_nodes, output_dim)
    assert out.dtype == jnp.float32
    assert bool(jnp.all(jnp.isfinite(out)))
    assert bool(jnp.allclose(out, ref, atol=1e-1, rtol=1e-1)), \
        f"max abs err = {float(jnp.max(jnp.abs(out - ref)))}"
    print("KERNEL_OK")
</pallas_src>

<mosaic_0001>
module attributes {stable_mosaic.version = 11 : i64} {
  func.func @_gcn_layer1_kernel(%arg0: i32, %arg1: memref<128x128xi8, #tpu.memory_space<vmem>>, %arg2: memref<128x1xf32, #tpu.memory_space<vmem>>, %arg3: memref<128x128xbf16, #tpu.memory_space<vmem>>, %arg4: memref<1x128xf32, #tpu.memory_space<vmem>>, %arg5: memref<128x128xbf16, #tpu.memory_space<vmem>>, %arg6: memref<128x128xbf16, #tpu.memory_space<vmem>>) attributes {dimension_semantics = [#tpu.dimension_semantics<parallel>], iteration_bounds = array<i64: 1>, scalar_prefetch = 0 : i64, scratch_operands = 0 : i64, tpu.core_type = #tpu.core_type<tc>, window_params = [{transform_indices = @transform_0, window_bounds = array<i64: 128, 128>}, {transform_indices = @transform_1, window_bounds = array<i64: 128, 1>}, {pipeline_mode = #tpu.pipeline_mode<synchronous>, transform_indices = @transform_2, window_bounds = array<i64: 128, 128>}, {pipeline_mode = #tpu.pipeline_mode<synchronous>, transform_indices = @transform_3, window_bounds = array<i64: 1, 128>}, {pipeline_mode = #tpu.pipeline_mode<synchronous>, transform_indices = @transform_4, window_bounds = array<i64: 128, 128>}, {transform_indices = @transform_5, window_bounds = array<i64: 128, 128>}]} {
    %c0 = arith.constant 0 : index
    %c0_0 = arith.constant 0 : index
    %0 = vector.load %arg1[%c0, %c0_0] : memref<128x128xi8, #tpu.memory_space<vmem>>, vector<128x128xi8>
    %1 = arith.sitofp %0 : vector<128x128xi8> to vector<128x128xbf16>
    %c0_1 = arith.constant 0 : index
    %c0_2 = arith.constant 0 : index
    %2 = vector.load %arg3[%c0_1, %c0_2] : memref<128x128xbf16, #tpu.memory_space<vmem>>, vector<128x128xbf16>
    %cst = arith.constant dense<0.000000e+00> : vector<128x128xf32>
    %3 = tpu.matmul %1, %2, %cst {dimension_numbers = #tpu.dot_dimension_numbers<[1], [0], [0], [1], [0, 0, 1, 1], [], []>} : vector<128x128xbf16>, vector<128x128xbf16>, vector<128x128xf32> -> vector<128x128xf32>
    %c0_3 = arith.constant 0 : index
    %c0_4 = arith.constant 0 : index
    %4 = vector.load %arg2[%c0_3, %c0_4] : memref<128x1xf32, #tpu.memory_space<vmem>>, vector<128x1xf32>
    %5 = vector.broadcast %4 : vector<128x1xf32> to vector<128x128xf32>
    %6 = arith.mulf %3, %5 : vector<128x128xf32>
    %c0_5 = arith.constant 0 : index
    %c0_6 = arith.constant 0 : index
    %7 = vector.load %arg4[%c0_5, %c0_6] : memref<1x128xf32, #tpu.memory_space<vmem>>, vector<1x128xf32>
    %8 = vector.broadcast %7 : vector<1x128xf32> to vector<128x128xf32>
    %9 = arith.addf %6, %8 : vector<128x128xf32>
    %cst_7 = arith.constant 0.000000e+00 : f32
    %10 = vector.broadcast %cst_7 : f32 to vector<128x128xf32>
    %11 = arith.maximumf %9, %10 : vector<128x128xf32>
    %12 = arith.truncf %11 : vector<128x128xf32> to vector<128x128xbf16>
    %c0_8 = arith.constant 0 : index
    %c0_9 = arith.constant 0 : index
    %13 = vector.load %arg5[%c0_8, %c0_9] : memref<128x128xbf16, #tpu.memory_space<vmem>>, vector<128x128xbf16>
    %cst_10 = arith.constant dense<0.000000e+00> : vector<128x128xf32>
    %14 = tpu.matmul %12, %13, %cst_10 {dimension_numbers = #tpu.dot_dimension_numbers<[1], [0], [0], [1], [0, 0, 1, 1], [], []>} : vector<128x128xbf16>, vector<128x128xbf16>, vector<128x128xf32> -> vector<128x128xf32>
    %15 = arith.truncf %14 : vector<128x128xf32> to vector<128x128xbf16>
    %c0_11 = arith.constant 0 : index
    %c0_12 = arith.constant 0 : index
    %16 = vector.load %arg6[%c0_11, %c0_12] : memref<128x128xbf16, #tpu.memory_space<vmem>>, vector<128x128xbf16>
    tpu.vector_store %arg6[%c0_11, %c0_12], %15 {strides = array<i32>} : memref<128x128xbf16, #tpu.memory_space<vmem>>, vector<128x128xbf16>,
    return
  }
  func.func @transform_0(%arg0: i32) -> (i32, i32) {
    %c0_i32 = arith.constant 0 : i32
    %c0_i32_0 = arith.constant 0 : i32
    return %arg0, %c0_i32 : i32, i32
  }
  func.func @transform_1(%arg0: i32) -> (i32, i32) {
    %c0_i32 = arith.constant 0 : i32
    %c0_i32_0 = arith.constant 0 : i32
    return %arg0, %c0_i32 : i32, i32
  }
  func.func @transform_2(%arg0: i32) -> (i32, i32) {
    %c0_i32 = arith.constant 0 : i32
    %c0_i32_0 = arith.constant 0 : i32
    %c0_i32_1 = arith.constant 0 : i32
    return %c0_i32, %c0_i32_0 : i32, i32
  }
  func.func @transform_3(%arg0: i32) -> (i32, i32) {
    %c0_i32 = arith.constant 0 : i32
    %c0_i32_0 = arith.constant 0 : i32
    %c0_i32_1 = arith.constant 0 : i32
    return %c0_i32, %c0_i32_0 : i32, i32
  }
  func.func @transform_4(%arg0: i32) -> (i32, i32) {
    %c0_i32 = arith.constant 0 : i32
    %c0_i32_0 = arith.constant 0 : i32
    %c0_i32_1 = arith.constant 0 : i32
    return %c0_i32, %c0_i32_0 : i32, i32
  }
  func.func @transform_5(%arg0: i32) -> (i32, i32) {
    %c0_i32 = arith.constant 0 : i32
    %c0_i32_0 = arith.constant 0 : i32
    return %arg0, %c0_i32 : i32, i32
  }
}

module attributes {stable_mosaic.version = 11 : i64} {
  func.func @_gcn_layer1_kernel(%arg0: i32, %arg1: memref<128x128xbf16, #tpu.memory_space<vmem>>, %arg2: memref<128x1xf32, #tpu.memory_space<vmem>>, %arg3: memref<128x128xbf16, #tpu.memory_space<vmem>>, %arg4: memref<1x128xf32, #tpu.memory_space<vmem>>, %arg5: memref<128x128xbf16, #tpu.memory_space<vmem>>, %arg6: memref<128x128xbf16, #tpu.memory_space<vmem>>) attributes {dimension_semantics = [#tpu.dimension_semantics<parallel>], iteration_bounds = array<i64: 1>, scalar_prefetch = 0 : i64, scratch_operands = 0 : i64, tpu.core_type = #tpu.core_type<tc>, window_params = [{transform_indices = @transform_0, window_bounds = array<i64: 128, 128>}, {transform_indices = @transform_1, window_bounds = array<i64: 128, 1>}, {pipeline_mode = #tpu.pipeline_mode<synchronous>, transform_indices = @transform_2, window_bounds = array<i64: 128, 128>}, {pipeline_mode = #tpu.pipeline_mode<synchronous>, transform_indices = @transform_3, window_bounds = array<i64: 1, 128>}, {pipeline_mode = #tpu.pipeline_mode<synchronous>, transform_indices = @transform_4, window_bounds = array<i64: 128, 128>}, {transform_indices = @transform_5, window_bounds = array<i64: 128, 128>}]} {
    %c0 = arith.constant 0 : index
    %c0_0 = arith.constant 0 : index
    %0 = vector.load %arg1[%c0, %c0_0] : memref<128x128xbf16, #tpu.memory_space<vmem>>, vector<128x128xbf16>
    %c0_1 = arith.constant 0 : index
    %c0_2 = arith.constant 0 : index
    %1 = vector.load %arg3[%c0_1, %c0_2] : memref<128x128xbf16, #tpu.memory_space<vmem>>, vector<128x128xbf16>
    %cst = arith.constant dense<0.000000e+00> : vector<128x128xf32>
    %2 = tpu.matmul %0, %1, %cst {dimension_numbers = #tpu.dot_dimension_numbers<[1], [0], [0], [1], [0, 0, 1, 1], [], []>} : vector<128x128xbf16>, vector<128x128xbf16>, vector<128x128xf32> -> vector<128x128xf32>
    %c0_3 = arith.constant 0 : index
    %c0_4 = arith.constant 0 : index
    %3 = vector.load %arg2[%c0_3, %c0_4] : memref<128x1xf32, #tpu.memory_space<vmem>>, vector<128x1xf32>
    %4 = vector.broadcast %3 : vector<128x1xf32> to vector<128x128xf32>
    %5 = arith.mulf %2, %4 : vector<128x128xf32>
    %c0_5 = arith.constant 0 : index
    %c0_6 = arith.constant 0 : index
    %6 = vector.load %arg4[%c0_5, %c0_6] : memref<1x128xf32, #tpu.memory_space<vmem>>, vector<1x128xf32>
    %7 = vector.broadcast %6 : vector<1x128xf32> to vector<128x128xf32>
    %8 = arith.addf %5, %7 : vector<128x128xf32>
    %cst_7 = arith.constant 0.000000e+00 : f32
    %9 = vector.broadcast %cst_7 : f32 to vector<128x128xf32>
    %10 = arith.maximumf %8, %9 : vector<128x128xf32>
    %11 = arith.truncf %10 : vector<128x128xf32> to vector<128x128xbf16>
    %c0_8 = arith.constant 0 : index
    %c0_9 = arith.constant 0 : index
    %12 = vector.load %arg5[%c0_8, %c0_9] : memref<128x128xbf16, #tpu.memory_space<vmem>>, vector<128x128xbf16>
    %cst_10 = arith.constant dense<0.000000e+00> : vector<128x128xf32>
    %13 = tpu.matmul %11, %12, %cst_10 {dimension_numbers = #tpu.dot_dimension_numbers<[1], [0], [0], [1], [0, 0, 1, 1], [], []>} : vector<128x128xbf16>, vector<128x128xbf16>, vector<128x128xf32> -> vector<128x128xf32>
    %14 = arith.truncf %13 : vector<128x128xf32> to vector<128x128xbf16>
    %c0_11 = arith.constant 0 : index
    %c0_12 = arith.constant 0 : index
    %15 = vector.load %arg6[%c0_11, %c0_12] : memref<128x128xbf16, #tpu.memory_space<vmem>>, vector<128x128xbf16>
    tpu.vector_store %arg6[%c0_11, %c0_12], %14 {strides = array<i32>} : memref<128x128xbf16, #tpu.memory_space<vmem>>, vector<128x128xbf16>,
    return
  }
  func.func @transform_0(%arg0: i32) -> (i32, i32) {
    %c0_i32 = arith.constant 0 : i32
    %c0_i32_0 = arith.constant 0 : i32
    return %arg0, %c0_i32 : i32, i32
  }
  func.func @transform_1(%arg0: i32) -> (i32, i32) {
    %c0_i32 = arith.constant 0 : i32
    %c0_i32_0 = arith.constant 0 : i32
    return %arg0, %c0_i32 : i32, i32
  }
  func.func @transform_2(%arg0: i32) -> (i32, i32) {
    %c0_i32 = arith.constant 0 : i32
    %c0_i32_0 = arith.constant 0 : i32
    %c0_i32_1 = arith.constant 0 : i32
    return %c0_i32, %c0_i32_0 : i32, i32
  }
  func.func @transform_3(%arg0: i32) -> (i32, i32) {
    %c0_i32 = arith.constant 0 : i32
    %c0_i32_0 = arith.constant 0 : i32
    %c0_i32_1 = arith.constant 0 : i32
    return %c0_i32, %c0_i32_0 : i32, i32
  }
  func.func @transform_4(%arg0: i32) -> (i32, i32) {
    %c0_i32 = arith.constant 0 : i32
    %c0_i32_0 = arith.constant 0 : i32
    %c0_i32_1 = arith.constant 0 : i32
    return %c0_i32, %c0_i32_0 : i32, i32
  }
  func.func @transform_5(%arg0: i32) -> (i32, i32) {
    %c0_i32 = arith.constant 0 : i32
    %c0_i32_0 = arith.constant 0 : i32
    return %arg0, %c0_i32 : i32, i32
  }
}

</mosaic_0001>

<llo_original>
// kernel: tpu_custom_call.1
$region0: #{tpu_custom_call.1}
  #allocation0 [shape = 'u32[]', space=smem, size = 0x4, offset = 0x4, fixed_abs, tag = 'smem constant byte address 0x4 - core index']
  #allocation1 [shape = 'u32[72,128]{1,0:T(1,128)}', space=vmem, size = 0x9000, scoped, tag = 'internal scratch']
  %s0 = inlined_call_operand.hbm [shape: s8[128,128], index: 0, kind: input, shape index: {}]
  %s1 = inlined_call_operand.vmem [shape: f32[128,1], index: 1, kind: input, shape index: {}]
  %s2 = inlined_call_operand.vmem [shape: bf16[128,128], index: 2, kind: input, shape index: {}]
  %s3 = inlined_call_operand.vmem [shape: f32[1,128], index: 3, kind: input, shape index: {}]
  %s4 = inlined_call_operand.vmem [shape: bf16[128,128], index: 4, kind: input, shape index: {}]
  %s5 = inlined_call_operand.hbm [shape: bf16[128,128], index: 5, kind: output, shape index: {}]
  %s6 = sld [smem:[#allocation0]]
  $region34: #{tpu_custom_call.1} parent=0
    _
  %s8 = ssub.s32 1, %s6
  %s9 = scalar_select 0, %s8, %s6
  $region1: #{tpu_custom_call.1} parent=0
    #allocation2 [shape = 'u8[16384]{0}', space=vmem, size = 0x4000, scoped, tag = 'input window, operand 0, single buffered']
    #allocation3 [shape = 's32[1]{0}', space=sflag, size = 0x4, scoped, tag = 'scoped memory for tpu_custom_call.1']
    #allocation4 [shape = 's32[1]{0}', space=sflag, size = 0x4, scoped, tag = 'scoped memory for tpu_custom_call.1']
    #allocation5 [shape = 'u8[32768]{0}', space=vmem, size = 0x8000, scoped, tag = 'output window, operand 0, single buffered']
    %10 = vsyncpa [#allocation3], 0
    %11 = vsyncpa [#allocation4], 0
    // Predicated region
    $region2: #{tpu_custom_call.1} parent=1 // pred_check
      _
    $region3: #{tpu_custom_call.1} parent=1 // pred_check_branch
      %13 = sbr.rel (0) target = $region5
    $region4: #{tpu_custom_call.1} parent=1 // pred_region
      %15 = vsyncadd [#allocation3], 0
      %s16 = sshll.u32 %s0, 4
      %s17 = int_to_ptr.hbm [resolvable:$true] %s16
      %s18 = sshll.u32 [#allocation2], 4
      %s19 = int_to_ptr.vmem [resolvable:$true] %s18
      %24 = dma.hbm_to_vmem [thread:$0]  %s17, 512, %s19, [#allocation3], 128, 128, 8
    $region5: #{tpu_custom_call.1} parent=1 // pred_fallthru
      _
    // Predicated region
    $region6: #{tpu_custom_call.1} parent=1 // pred_check
      _
    $region7: #{tpu_custom_call.1} parent=1 // pred_check_branch
      %26 = sbr.rel (0) target = $region9
    $region8: #{tpu_custom_call.1} parent=1 // pred_region
      _
    $region9: #{tpu_custom_call.1} parent=1 // pred_fallthru
      _
    // Predicated region
    $region10: #{tpu_custom_call.1} parent=1 // pred_check
      _
    $region11: #{tpu_custom_call.1} parent=1 // pred_check_branch
      %28 = sbr.rel (0) target = $region13
    $region12: #{tpu_custom_call.1} parent=1 // pred_region
      _
    $region13: #{tpu_custom_call.1} parent=1 // pred_fallthru
      _
    // Predicated region
    $region14: #{tpu_custom_call.1} parent=1 // pred_check
      _
    $region15: #{tpu_custom_call.1} parent=1 // pred_check_branch
      %30 = sbr.rel (0) target = $region17
    $region16: #{tpu_custom_call.1} parent=1 // pred_region
      _
    $region17: #{tpu_custom_call.1} parent=1 // pred_fallthru
      _
    // Predicated region
    $region18: #{tpu_custom_call.1} parent=1 // pred_check
      _
    $region19: #{tpu_custom_call.1} parent=1 // pred_check_branch
      %32 = sbr.rel (0) target = $region21
    $region20: #{tpu_custom_call.1} parent=1 // pred_region
      _
    $region21: #{tpu_custom_call.1} parent=1 // pred_fallthru
      _
    // Predicated region
    $region22: #{tpu_custom_call.1} parent=1 // pred_check
      _
    $region23: #{tpu_custom_call.1} parent=1 // pred_check_branch
      %34 = sbr.rel (0) target = $region25
    $region24: #{tpu_custom_call.1} parent=1 // pred_region
      %36 = dma.done [#allocation3], 512
    $region25: #{tpu_custom_call.1} parent=1 // pred_fallthru
      _
    %v37 = vld [vmem:[#allocation2] sm:$0xff]
    %v38 = vld [vmem:[#allocation2 + $0x8] sm:$0xff]
    %v39 = vld [vmem:[#allocation2 + $0x10] sm:$0xff]
    %v40 = vld [vmem:[#allocation2 + $0x18] sm:$0xff]
    %v41 = vunpack.c.0.s8 %v37
    %v42 = vunpack.c.1.s8 %v37
    %v43 = vunpack.c.2.s8 %v37
    %v44 = vunpack.c.3.s8 %v37
    %v45 = vunpack.c.0.s8 %v38
    %v46 = vunpack.c.1.s8 %v38
    %v47 = vunpack.c.2.s8 %v38
    %v48 = vunpack.c.3.s8 %v38
    %v49 = vunpack.c.0.s8 %v39
    %v50 = vunpack.c.1.s8 %v39
    %v51 = vunpack.c.2.s8 %v39
    %v52 = vunpack.c.3.s8 %v39
    %v53 = vunpack.c.0.s8 %v40
    %v54 = vunpack.c.1.s8 %v40
    %v55 = vunpack.c.2.s8 %v40
    %v56 = vunpack.c.3.s8 %v40
    %v57 = vcvt.s32.f32 %v41
    %v58 = vcvt.s32.f32 %v42
    %v59 = vcvt.s32.f32 %v43
    %v60 = vcvt.s32.f32 %v44
    %v61 = vcvt.s32.f32 %v45
    %v62 = vcvt.s32.f32 %v46
    %v63 = vcvt.s32.f32 %v47
    %v64 = vcvt.s32.f32 %v48
    %v65 = vcvt.s32.f32 %v49
    %v66 = vcvt.s32.f32 %v50
    %v67 = vcvt.s32.f32 %v51
    %v68 = vcvt.s32.f32 %v52
    %v69 = vcvt.s32.f32 %v53
    %v70 = vcvt.s32.f32 %v54
    %v71 = vcvt.s32.f32 %v55
    %v72 = vcvt.s32.f32 %v56
    %v73 = vpack.c.bf16 %v58, %v57
    %v74 = vpack.c.bf16 %v60, %v59
    %v75 = vpack.c.bf16 %v62, %v61
    %v76 = vpack.c.bf16 %v64, %v63
    %v77 = vpack.c.bf16 %v66, %v65
    %v78 = vpack.c.bf16 %v68, %v67
    %v79 = vpack.c.bf16 %v70, %v69
    %v80 = vpack.c.bf16 %v72, %v71
    %v81 = vld [vmem:[%s2] sm:$0xf]
    %v82 = vld [vmem:[%s2 + $0x4] sm:$0xf]
    %v83 = vld [vmem:[%s2 + $0x8] sm:$0xf]
    %v84 = vld [vmem:[%s2 + $0xc] sm:$0xf]
    %v85 = vld [vmem:[%s2 + $0x10] sm:$0xf]
    %v86 = vld [vmem:[%s2 + $0x14] sm:$0xf]
    %v87 = vld [vmem:[%s2 + $0x18] sm:$0xf]
    %v88 = vld [vmem:[%s2 + $0x1c] sm:$0xf]
    %v89 = vld [vmem:[%s2 + $0x20] sm:$0xf]
    %v90 = vld [vmem:[%s2 + $0x24] sm:$0xf]
    %v91 = vld [vmem:[%s2 + $0x28] sm:$0xf]
    %v92 = vld [vmem:[%s2 + $0x2c] sm:$0xf]
    %v93 = vld [vmem:[%s2 + $0x30] sm:$0xf]
    %v94 = vld [vmem:[%s2 + $0x34] sm:$0xf]
    %v95 = vld [vmem:[%s2 + $0x38] sm:$0xf]
    %v96 = vld [vmem:[%s2 + $0x3c] sm:$0xf]
    %v113 = vunpack.c.l.b16 %v81
    %v114 = vunpack.c.l.b16 %v82
    %v115 = vunpack.c.l.b16 %v83
    %v116 = vunpack.c.l.b16 %v84
    %v117 = vunpack.c.l.b16 %v85
    %v118 = vunpack.c.l.b16 %v86
    %v119 = vunpack.c.l.b16 %v87
    %v120 = vunpack.c.l.b16 %v88
    %v121 = vunpack.c.l.b16 %v89
    %v122 = vunpack.c.l.b16 %v90
    %v123 = vunpack.c.l.b16 %v91
    %v124 = vunpack.c.l.b16 %v92
    %v125 = vunpack.c.l.b16 %v93
    %v126 = vunpack.c.l.b16 %v94
    %v127 = vunpack.c.l.b16 %v95
    %v128 = vunpack.c.l.b16 %v96
    %v129 = vpack.c.b16 %v114, %v113
    %v130 = vpack.c.b16 %v116, %v115
    %v131 = vpack.c.b16 %v118, %v117
    %v132 = vpack.c.b16 %v120, %v119
    %v133 = vpack.c.b16 %v122, %v121
    %v134 = vpack.c.b16 %v124, %v123
    %v135 = vpack.c.b16 %v126, %v125
    %v136 = vpack.c.b16 %v128, %v127
    %145 = vmatpush.bf16.msra.mxu0 %v136
    %146 = vmatpush.bf16.msra.mxu0 %v135
    %147 = vmatpush.bf16.msra.mxu0 %v134
    %148 = vmatpush.bf16.msra.mxu0 %v133
    %149 = vmatpush.bf16.msra.mxu0 %v132
    %150 = vmatpush.bf16.msra.mxu0 %v131
    %151 = vmatpush.bf16.msra.mxu0 %v130
    %152 = vmatpush.bf16.msra.mxu0 %v129
    %153 = vmatmul.bf16.gmra.mxu0 %v73
    %v154 = vpop.f32.mrf.mxu0
    %v155 = vadd.f32 0.0, %v154
    %v156 = vpop.f32.mrf.mxu0
    %v157 = vadd.f32 0.0, %v156
    %158 = vmatmul.bf16.gmra.mxu0 %v74
    %v159 = vpop.f32.mrf.mxu0
    %v160 = vadd.f32 0.0, %v159
    %v161 = vpop.f32.mrf.mxu0
    %v162 = vadd.f32 0.0, %v161
    %163 = vmatmul.bf16.gmra.mxu0 %v75
    %v164 = vpop.f32.mrf.mxu0
    %v165 = vadd.f32 0.0, %v164
    %v166 = vpop.f32.mrf.mxu0
    %v167 = vadd.f32 0.0, %v166
    %168 = vmatmul.bf16.gmra.mxu0 %v76
    %v169 = vpop.f32.mrf.mxu0
    %v170 = vadd.f32 0.0, %v169
    %v171 = vpop.f32.mrf.mxu0
    %v172 = vadd.f32 0.0, %v171
    %173 = vmatmul.bf16.gmra.mxu0 %v77
    %v174 = vpop.f32.mrf.mxu0
    %v175 = vadd.f32 0.0, %v174
    %v176 = vpop.f32.mrf.mxu0
    %v177 = vadd.f32 0.0, %v176
    %178 = vmatmul.bf16.gmra.mxu0 %v78
    %v179 = vpop.f32.mrf.mxu0
    %v180 = vadd.f32 0.0, %v179
    %v181 = vpop.f32.mrf.mxu0
    %v182 = vadd.f32 0.0, %v181
    %183 = vmatmul.bf16.gmra.mxu0 %v79
    %v184 = vpop.f32.mrf.mxu0
    %v185 = vadd.f32 0.0, %v184
    %v186 = vpop.f32.mrf.mxu0
    %v187 = vadd.f32 0.0, %v186
    %188 = vmatmul.bf16.gmra.mxu0 %v80
    %v189 = vpop.f32.mrf.mxu0
    %v190 = vadd.f32 0.0, %v189
    %v191 = vpop.f32.mrf.mxu0
    %v192 = vadd.f32 0.0, %v191
    %193 = vdwg.mxu0
    %v194 = vld [vmem:[%s1] sm:$0xff]
    %v195 = vld [vmem:[%s1 + $0x8] sm:$0xff]
    %v196 = vld [vmem:[%s1 + $0x10] sm:$0xff]
    %v197 = vld [vmem:[%s1 + $0x18] sm:$0xff]
    %v198 = vld [vmem:[%s1 + $0x20] sm:$0xff]
    %v199 = vld [vmem:[%s1 + $0x28] sm:$0xff]
    %v200 = vld [vmem:[%s1 + $0x30] sm:$0xff]
    %v201 = vld [vmem:[%s1 + $0x38] sm:$0xff]
    %v202 = vld [vmem:[%s1 + $0x40] sm:$0xff]
    %v203 = vld [vmem:[%s1 + $0x48] sm:$0xff]
    %v204 = vld [vmem:[%s1 + $0x50] sm:$0xff]
    %v205 = vld [vmem:[%s1 + $0x58] sm:$0xff]
    %v206 = vld [vmem:[%s1 + $0x60] sm:$0xff]
    %v207 = vld [vmem:[%s1 + $0x68] sm:$0xff]
    %v208 = vld [vmem:[%s1 + $0x70] sm:$0xff]
    %v209 = vld [vmem:[%s1 + $0x78] sm:$0xff]
    %211 = vset.pattern.permute.xlu0 0
    %212 = vperm.xlu0 %211, %v194
    %v213 = vpop.permute.xlu0 %212
    %216 = vset.pattern.permute.xlu0 0
    %217 = vperm.xlu0 %216, %v195
    %v218 = vpop.permute.xlu0 %217
    %221 = vset.pattern.permute.xlu0 0
    %222 = vperm.xlu0 %221, %v196
    %v223 = vpop.permute.xlu0 %222
    %226 = vset.pattern.permute.xlu0 0
    %227 = vperm.xlu0 %226, %v197
    %v228 = vpop.permute.xlu0 %227
    %231 = vset.pattern.permute.xlu0 0
    %232 = vperm.xlu0 %231, %v198
    %v233 = vpop.permute.xlu0 %232
    %236 = vset.pattern.permute.xlu0 0
    %237 = vperm.xlu0 %236, %v199
    %v238 = vpop.permute.xlu0 %237
    %241 = vset.pattern.permute.xlu0 0
    %242 = vperm.xlu0 %241, %v200
    %v243 = vpop.permute.xlu0 %242
    %246 = vset.pattern.permute.xlu0 0
    %247 = vperm.xlu0 %246, %v201
    %v248 = vpop.permute.xlu0 %247
    %251 = vset.pattern.permute.xlu0 0
    %252 = vperm.xlu0 %251, %v202
    %v253 = vpop.permute.xlu0 %252
    %256 = vset.pattern.permute.xlu0 0
    %257 = vperm.xlu0 %256, %v203
    %v258 = vpop.permute.xlu0 %257
    %261 = vset.pattern.permute.xlu0 0
    %262 = vperm.xlu0 %261, %v204
    %v263 = vpop.permute.xlu0 %262
    %266 = vset.pattern.permute.xlu0 0
    %267 = vperm.xlu0 %266, %v205
    %v268 = vpop.permute.xlu0 %267
    %271 = vset.pattern.permute.xlu0 0
    %272 = vperm.xlu0 %271, %v206
    %v273 = vpop.permute.xlu0 %272
    %276 = vset.pattern.permute.xlu0 0
    %277 = vperm.xlu0 %276, %v207
    %v278 = vpop.permute.xlu0 %277
    %281 = vset.pattern.permute.xlu0 0
    %282 = vperm.xlu0 %281, %v208
    %v283 = vpop.permute.xlu0 %282
    %286 = vset.pattern.permute.xlu0 0
    %287 = vperm.xlu0 %286, %v209
    %v288 = vpop.permute.xlu0 %287
    %v290 = vmul.f32 %v155, %v213
    %v291 = vmul.f32 %v157, %v218
    %v292 = vmul.f32 %v160, %v223
    %v293 = vmul.f32 %v162, %v228
    %v294 = vmul.f32 %v165, %v233
    %v295 = vmul.f32 %v167, %v238
    %v296 = vmul.f32 %v170, %v243
    %v297 = vmul.f32 %v172, %v248
    %v298 = vmul.f32 %v175, %v253
    %v299 = vmul.f32 %v177, %v258
    %v300 = vmul.f32 %v180, %v263
    %v301 = vmul.f32 %v182, %v268
    %v302 = vmul.f32 %v185, %v273
    %v303 = vmul.f32 %v187, %v278
    %v304 = vmul.f32 %v190, %v283
    %v305 = vmul.f32 %v192, %v288
    %v306 = vld [vmem:[%s3] sm:$0x1]
    %v308 = vperm.slane %v306, 0
    %v310 = vadd.f32 %v290, %v308
    %v311 = vadd.f32 %v291, %v308
    %v312 = vadd.f32 %v292, %v308
    %v313 = vadd.f32 %v293, %v308
    %v314 = vadd.f32 %v294, %v308
    %v315 = vadd.f32 %v295, %v308
    %v316 = vadd.f32 %v296, %v308
    %v317 = vadd.f32 %v297, %v308
    %v318 = vadd.f32 %v298, %v308
    %v319 = vadd.f32 %v299, %v308
    %v320 = vadd.f32 %v300, %v308
    %v321 = vadd.f32 %v301, %v308
    %v322 = vadd.f32 %v302, %v308
    %v323 = vadd.f32 %v303, %v308
    %v324 = vadd.f32 %v304, %v308
    %v325 = vadd.f32 %v305, %v308
    %v326 = vmax.f32 %v310, 0.0
    %v327 = vmax.f32 %v311, 0.0
    %v328 = vmax.f32 %v312, 0.0
    %v329 = vmax.f32 %v313, 0.0
    %v330 = vmax.f32 %v314, 0.0
    %v331 = vmax.f32 %v315, 0.0
    %v332 = vmax.f32 %v316, 0.0
    %v333 = vmax.f32 %v317, 0.0
    %v334 = vmax.f32 %v318, 0.0
    %v335 = vmax.f32 %v319, 0.0
    %v336 = vmax.f32 %v320, 0.0
    %v337 = vmax.f32 %v321, 0.0
    %v338 = vmax.f32 %v322, 0.0
    %v339 = vmax.f32 %v323, 0.0
    %v340 = vmax.f32 %v324, 0.0
    %v341 = vmax.f32 %v325, 0.0
    %v342 = vpack.c.bf16 %v327, %v326
    %v343 = vpack.c.bf16 %v329, %v328
    %v344 = vpack.c.bf16 %v331, %v330
    %v345 = vpack.c.bf16 %v333, %v332
    %v346 = vpack.c.bf16 %v335, %v334
    %v347 = vpack.c.bf16 %v337, %v336
    %v348 = vpack.c.bf16 %v339, %v338
    %v349 = vpack.c.bf16 %v341, %v340
    %v350 = vld [vmem:[%s4] sm:$0xf]
    %v351 = vld [vmem:[%s4 + $0x4] sm:$0xf]
    %v352 = vld [vmem:[%s4 + $0x8] sm:$0xf]
    %v353 = vld [vmem:[%s4 + $0xc] sm:$0xf]
    %v354 = vld [vmem:[%s4 + $0x10] sm:$0xf]
    %v355 = vld [vmem:[%s4 + $0x14] sm:$0xf]
    %v356 = vld [vmem:[%s4 + $0x18] sm:$0xf]
    %v357 = vld [vmem:[%s4 + $0x1c] sm:$0xf]
    %v358 = vld [vmem:[%s4 + $0x20] sm:$0xf]
    %v359 = vld [vmem:[%s4 + $0x24] sm:$0xf]
    %v360 = vld [vmem:[%s4 + $0x28] sm:$0xf]
    %v361 = vld [vmem:[%s4 + $0x2c] sm:$0xf]
    %v362 = vld [vmem:[%s4 + $0x30] sm:$0xf]
    %v363 = vld [vmem:[%s4 + $0x34] sm:$0xf]
    %v364 = vld [vmem:[%s4 + $0x38] sm:$0xf]
    %v365 = vld [vmem:[%s4 + $0x3c] sm:$0xf]
    %v382 = vunpack.c.l.b16 %v350
    %v383 = vunpack.c.l.b16 %v351
    %v384 = vunpack.c.l.b16 %v352
    %v385 = vunpack.c.l.b16 %v353
    %v386 = vunpack.c.l.b16 %v354
    %v387 = vunpack.c.l.b16 %v355
    %v388 = vunpack.c.l.b16 %v356
    %v389 = vunpack.c.l.b16 %v357
    %v390 = vunpack.c.l.b16 %v358
    %v391 = vunpack.c.l.b16 %v359
    %v392 = vunpack.c.l.b16 %v360
    %v393 = vunpack.c.l.b16 %v361
    %v394 = vunpack.c.l.b16 %v362
    %v395 = vunpack.c.l.b16 %v363
    %v396 = vunpack.c.l.b16 %v364
    %v397 = vunpack.c.l.b16 %v365
    %v398 = vpack.c.b16 %v383, %v382
    %v399 = vpack.c.b16 %v385, %v384
    %v400 = vpack.c.b16 %v387, %v386
    %v401 = vpack.c.b16 %v389, %v388
    %v402 = vpack.c.b16 %v391, %v390
    %v403 = vpack.c.b16 %v393, %v392
    %v404 = vpack.c.b16 %v395, %v394
    %v405 = vpack.c.b16 %v397, %v396
    %414 = vmatpush.bf16.msra.mxu0 %v405
    %415 = vmatpush.bf16.msra.mxu0 %v404
    %416 = vmatpush.bf16.msra.mxu0 %v403
    %417 = vmatpush.bf16.msra.mxu0 %v402
    %418 = vmatpush.bf16.msra.mxu0 %v401
    %419 = vmatpush.bf16.msra.mxu0 %v400
    %420 = vmatpush.bf16.msra.mxu0 %v399
    %421 = vmatpush.bf16.msra.mxu0 %v398
    %422 = vmatmul.bf16.gmra.mxu0 %v342
    %v423 = vpop.f32.mrf.mxu0
    %v424 = vadd.f32 0.0, %v423
    %v425 = vpop.f32.mrf.mxu0
    %v426 = vadd.f32 0.0, %v425
    %427 = vmatmul.bf16.gmra.mxu0 %v343
    %v428 = vpop.f32.mrf.mxu0
    %v429 = vadd.f32 0.0, %v428
    %v430 = vpop.f32.mrf.mxu0
    %v431 = vadd.f32 0.0, %v430
    %432 = vmatmul.bf16.gmra.mxu0 %v344
    %v433 = vpop.f32.mrf.mxu0
    %v434 = vadd.f32 0.0, %v433
    %v435 = vpop.f32.mrf.mxu0
    %v436 = vadd.f32 0.0, %v435
    %437 = vmatmul.bf16.gmra.mxu0 %v345
    %v438 = vpop.f32.mrf.mxu0
    %v439 = vadd.f32 0.0, %v438
    %v440 = vpop.f32.mrf.mxu0
    %v441 = vadd.f32 0.0, %v440
    %442 = vmatmul.bf16.gmra.mxu0 %v346
    %v443 = vpop.f32.mrf.mxu0
    %v444 = vadd.f32 0.0, %v443
    %v445 = vpop.f32.mrf.mxu0
    %v446 = vadd.f32 0.0, %v445
    %447 = vmatmul.bf16.gmra.mxu0 %v347
    %v448 = vpop.f32.mrf.mxu0
    %v449 = vadd.f32 0.0, %v448
    %v450 = vpop.f32.mrf.mxu0
    %v451 = vadd.f32 0.0, %v450
    %452 = vmatmul.bf16.gmra.mxu0 %v348
    %v453 = vpop.f32.mrf.mxu0
    %v454 = vadd.f32 0.0, %v453
    %v455 = vpop.f32.mrf.mxu0
    %v456 = vadd.f32 0.0, %v455
    %457 = vmatmul.bf16.gmra.mxu0 %v349
    %v458 = vpop.f32.mrf.mxu0
    %v459 = vadd.f32 0.0, %v458
    %v460 = vpop.f32.mrf.mxu0
    %v461 = vadd.f32 0.0, %v460
    %462 = vdwg.mxu0
    %v463 = vpack.c.bf16 %v424, %v424
    %v464 = vpack.c.bf16 %v426, %v426
    %v465 = vpack.c.bf16 %v429, %v429
    %v466 = vpack.c.bf16 %v431, %v431
    %v467 = vpack.c.bf16 %v434, %v434
    %v468 = vpack.c.bf16 %v436, %v436
    %v469 = vpack.c.bf16 %v439, %v439
    %v470 = vpack.c.bf16 %v441, %v441
    %v471 = vpack.c.bf16 %v444, %v444
    %v472 = vpack.c.bf16 %v446, %v446
    %v473 = vpack.c.bf16 %v449, %v449
    %v474 = vpack.c.bf16 %v451, %v451
    %v475 = vpack.c.bf16 %v454, %v454
    %v476 = vpack.c.bf16 %v456, %v456
    %v477 = vpack.c.bf16 %v459, %v459
    %v478 = vpack.c.bf16 %v461, %v461
    %479 = vst [vmem:[#allocation5] sm:$0xf] %v463
    %480 = vst [vmem:[#allocation5 + $0x4] sm:$0xf] %v464
    %481 = vst [vmem:[#allocation5 + $0x8] sm:$0xf] %v465
    %482 = vst [vmem:[#allocation5 + $0xc] sm:$0xf] %v466
    %483 = vst [vmem:[#allocation5 + $0x10] sm:$0xf] %v467
    %484 = vst [vmem:[#allocation5 + $0x14] sm:$0xf] %v468
    %485 = vst [vmem:[#allocation5 + $0x18] sm:$0xf] %v469
    %486 = vst [vmem:[#allocation5 + $0x1c] sm:$0xf] %v470
    %487 = vst [vmem:[#allocation5 + $0x20] sm:$0xf] %v471
    %488 = vst [vmem:[#allocation5 + $0x24] sm:$0xf] %v472
    %489 = vst [vmem:[#allocation5 + $0x28] sm:$0xf] %v473
    %490 = vst [vmem:[#allocation5 + $0x2c] sm:$0xf] %v474
    %491 = vst [vmem:[#allocation5 + $0x30] sm:$0xf] %v475
    %492 = vst [vmem:[#allocation5 + $0x34] sm:$0xf] %v476
    %493 = vst [vmem:[#allocation5 + $0x38] sm:$0xf] %v477
    %494 = vst [vmem:[#allocation5 + $0x3c] sm:$0xf] %v478
    // Predicated region
    $region26: #{tpu_custom_call.1} parent=1 // pred_check
      _
    $region27: #{tpu_custom_call.1} parent=1 // pred_check_branch
      %496 = sbr.rel (0) target = $region29
    $region28: #{tpu_custom_call.1} parent=1 // pred_region
      %498 = vsyncadd [#allocation4], 0
      %s499 = sshll.u32 [#allocation5], 4
      %s500 = int_to_ptr.vmem [resolvable:$true] %s499
      %s501 = sshll.u32 %s5, 4
      %s502 = int_to_ptr.hbm [resolvable:$true] %s501
      %507 = dma.vmem_to_hbm [thread:$0]  %s500, 1024, %s502, [#allocation4], 64, 64, 4
    $region29: #{tpu_custom_call.1} parent=1 // pred_fallthru
      _
    // Predicated region
    $region30: #{tpu_custom_call.1} parent=1 // pred_check
      _
    $region31: #{tpu_custom_call.1} parent=1 // pred_check_branch
      %509 = sbr.rel (0) target = $region33
    $region32: #{tpu_custom_call.1} parent=1 // pred_region
      %511 = dma.done [#allocation4], 1024
    $region33: #{tpu_custom_call.1} parent=1 // pred_fallthru
      _
    %512 = vsyncpa [#allocation3], 1
    %513 = vsyncpa [#allocation4], 1

// kernel: tpu_custom_call.1
$region0: #{tpu_custom_call.1}
  #allocation0 [shape = 'u32[]', space=smem, size = 0x4, offset = 0x4, fixed_abs, tag = 'smem constant byte address 0x4 - core index']
  #allocation1 [shape = 'u32[72,128]{1,0:T(1,128)}', space=vmem, size = 0x9000, scoped, tag = 'internal scratch']
  %s0 = inlined_call_operand.vmem [shape: bf16[128,128], index: 0, kind: input, shape index: {}]
  %s1 = inlined_call_operand.vmem [shape: f32[128,1], index: 1, kind: input, shape index: {}]
  %s2 = inlined_call_operand.vmem [shape: bf16[128,128], index: 2, kind: input, shape index: {}]
  %s3 = inlined_call_operand.vmem [shape: f32[1,128], index: 3, kind: input, shape index: {}]
  %s4 = inlined_call_operand.hbm [shape: bf16[128,128], index: 4, kind: input, shape index: {}]
  %s5 = inlined_call_operand.hbm [shape: bf16[128,128], index: 5, kind: output, shape index: {}]
  %s6 = sld [smem:[#allocation0]]
  $region34: #{tpu_custom_call.1} parent=0
    _
  %s8 = ssub.s32 1, %s6
  %s9 = scalar_select 0, %s8, %s6
  $region1: #{tpu_custom_call.1} parent=0
    #allocation2 [shape = 'u8[32768]{0}', space=vmem, size = 0x8000, scoped, tag = 'input window, operand 4, single buffered']
    #allocation3 [shape = 's32[1]{0}', space=sflag, size = 0x4, scoped, tag = 'scoped memory for tpu_custom_call.1']
    #allocation4 [shape = 's32[1]{0}', space=sflag, size = 0x4, scoped, tag = 'scoped memory for tpu_custom_call.1']
    #allocation5 [shape = 'u8[32768]{0}', space=vmem, size = 0x8000, scoped, tag = 'output window, operand 0, single buffered']
    %10 = vsyncpa [#allocation3], 0
    %11 = vsyncpa [#allocation4], 0
    // Predicated region
    $region2: #{tpu_custom_call.1} parent=1 // pred_check
      _
    $region3: #{tpu_custom_call.1} parent=1 // pred_check_branch
      %13 = sbr.rel (0) target = $region5
    $region4: #{tpu_custom_call.1} parent=1 // pred_region
      _
    $region5: #{tpu_custom_call.1} parent=1 // pred_fallthru
      _
    // Predicated region
    $region6: #{tpu_custom_call.1} parent=1 // pred_check
      _
    $region7: #{tpu_custom_call.1} parent=1 // pred_check_branch
      %15 = sbr.rel (0) target = $region9
    $region8: #{tpu_custom_call.1} parent=1 // pred_region
      _
    $region9: #{tpu_custom_call.1} parent=1 // pred_fallthru
      _
    // Predicated region
    $region10: #{tpu_custom_call.1} parent=1 // pred_check
      _
    $region11: #{tpu_custom_call.1} parent=1 // pred_check_branch
      %17 = sbr.rel (0) target = $region13
    $region12: #{tpu_custom_call.1} parent=1 // pred_region
      _
    $region13: #{tpu_custom_call.1} parent=1 // pred_fallthru
      _
    // Predicated region
    $region14: #{tpu_custom_call.1} parent=1 // pred_check
      _
    $region15: #{tpu_custom_call.1} parent=1 // pred_check_branch
      %19 = sbr.rel (0) target = $region17
    $region16: #{tpu_custom_call.1} parent=1 // pred_region
      _
    $region17: #{tpu_custom_call.1} parent=1 // pred_fallthru
      _
    // Predicated region
    $region18: #{tpu_custom_call.1} parent=1 // pred_check
      _
    $region19: #{tpu_custom_call.1} parent=1 // pred_check_branch
      %21 = sbr.rel (0) target = $region21
    $region20: #{tpu_custom_call.1} parent=1 // pred_region
      %23 = vsyncadd [#allocation3], 0
      %s24 = sshll.u32 %s4, 4
      %s25 = int_to_ptr.hbm [resolvable:$true] %s24
      %s26 = sshll.u32 [#allocation2], 4
      %s27 = int_to_ptr.vmem [resolvable:$true] %s26
      %32 = dma.hbm_to_vmem [thread:$0]  %s25, 1024, %s27, [#allocation3], 64, 64, 4
    $region21: #{tpu_custom_call.1} parent=1 // pred_fallthru
      _
    // Predicated region
    $region22: #{tpu_custom_call.1} parent=1 // pred_check
      _
    $region23: #{tpu_custom_call.1} parent=1 // pred_check_branch
      %34 = sbr.rel (0) target = $region25
    $region24: #{tpu_custom_call.1} parent=1 // pred_region
      %36 = dma.done [#allocation3], 1024
    $region25: #{tpu_custom_call.1} parent=1 // pred_fallthru
      _
    %v37 = vld [vmem:[%s0] sm:$0xf]
    %v38 = vld [vmem:[%s0 + $0x4] sm:$0xf]
    %v39 = vld [vmem:[%s0 + $0x8] sm:$0xf]
    %v40 = vld [vmem:[%s0 + $0xc] sm:$0xf]
    %v41 = vld [vmem:[%s0 + $0x10] sm:$0xf]
    %v42 = vld [vmem:[%s0 + $0x14] sm:$0xf]
    %v43 = vld [vmem:[%s0 + $0x18] sm:$0xf]
    %v44 = vld [vmem:[%s0 + $0x1c] sm:$0xf]
    %v45 = vld [vmem:[%s0 + $0x20] sm:$0xf]
    %v46 = vld [vmem:[%s0 + $0x24] sm:$0xf]
    %v47 = vld [vmem:[%s0 + $0x28] sm:$0xf]
    %v48 = vld [vmem:[%s0 + $0x2c] sm:$0xf]
    %v49 = vld [vmem:[%s0 + $0x30] sm:$0xf]
    %v50 = vld [vmem:[%s0 + $0x34] sm:$0xf]
    %v51 = vld [vmem:[%s0 + $0x38] sm:$0xf]
    %v52 = vld [vmem:[%s0 + $0x3c] sm:$0xf]
    %v53 = vld [vmem:[%s2] sm:$0xf]
    %v54 = vld [vmem:[%s2 + $0x4] sm:$0xf]
    %v55 = vld [vmem:[%s2 + $0x8] sm:$0xf]
    %v56 = vld [vmem:[%s2 + $0xc] sm:$0xf]
    %v57 = vld [vmem:[%s2 + $0x10] sm:$0xf]
    %v58 = vld [vmem:[%s2 + $0x14] sm:$0xf]
    %v59 = vld [vmem:[%s2 + $0x18] sm:$0xf]
    %v60 = vld [vmem:[%s2 + $0x1c] sm:$0xf]
    %v61 = vld [vmem:[%s2 + $0x20] sm:$0xf]
    %v62 = vld [vmem:[%s2 + $0x24] sm:$0xf]
    %v63 = vld [vmem:[%s2 + $0x28] sm:$0xf]
    %v64 = vld [vmem:[%s2 + $0x2c] sm:$0xf]
    %v65 = vld [vmem:[%s2 + $0x30] sm:$0xf]
    %v66 = vld [vmem:[%s2 + $0x34] sm:$0xf]
    %v67 = vld [vmem:[%s2 + $0x38] sm:$0xf]
    %v68 = vld [vmem:[%s2 + $0x3c] sm:$0xf]
    %v85 = vunpack.c.l.b16 %v37
    %v86 = vunpack.c.l.b16 %v38
    %v87 = vunpack.c.l.b16 %v39
    %v88 = vunpack.c.l.b16 %v40
    %v89 = vunpack.c.l.b16 %v41
    %v90 = vunpack.c.l.b16 %v42
    %v91 = vunpack.c.l.b16 %v43
    %v92 = vunpack.c.l.b16 %v44
    %v93 = vunpack.c.l.b16 %v45
    %v94 = vunpack.c.l.b16 %v46
    %v95 = vunpack.c.l.b16 %v47
    %v96 = vunpack.c.l.b16 %v48
    %v97 = vunpack.c.l.b16 %v49
    %v98 = vunpack.c.l.b16 %v50
    %v99 = vunpack.c.l.b16 %v51
    %v100 = vunpack.c.l.b16 %v52
    %v101 = vpack.c.b16 %v86, %v85
    %v102 = vpack.c.b16 %v88, %v87
    %v103 = vpack.c.b16 %v90, %v89
    %v104 = vpack.c.b16 %v92, %v91
    %v105 = vpack.c.b16 %v94, %v93
    %v106 = vpack.c.b16 %v96, %v95
    %v107 = vpack.c.b16 %v98, %v97
    %v108 = vpack.c.b16 %v100, %v99
    %v133 = vunpack.c.l.b16 %v53
    %v134 = vunpack.c.l.b16 %v54
    %v135 = vunpack.c.l.b16 %v55
    %v136 = vunpack.c.l.b16 %v56
    %v137 = vunpack.c.l.b16 %v57
    %v138 = vunpack.c.l.b16 %v58
    %v139 = vunpack.c.l.b16 %v59
    %v140 = vunpack.c.l.b16 %v60
    %v141 = vunpack.c.l.b16 %v61
    %v142 = vunpack.c.l.b16 %v62
    %v143 = vunpack.c.l.b16 %v63
    %v144 = vunpack.c.l.b16 %v64
    %v145 = vunpack.c.l.b16 %v65
    %v146 = vunpack.c.l.b16 %v66
    %v147 = vunpack.c.l.b16 %v67
    %v148 = vunpack.c.l.b16 %v68
    %v149 = vpack.c.b16 %v134, %v133
    %v150 = vpack.c.b16 %v136, %v135
    %v151 = vpack.c.b16 %v138, %v137
    %v152 = vpack.c.b16 %v140, %v139
    %v153 = vpack.c.b16 %v142, %v141
    %v154 = vpack.c.b16 %v144, %v143
    %v155 = vpack.c.b16 %v146, %v145
    %v156 = vpack.c.b16 %v148, %v147
    %165 = vmatpush.bf16.msra.mxu0 %v156
    %166 = vmatpush.bf16.msra.mxu0 %v155
    %167 = vmatpush.bf16.msra.mxu0 %v154
    %168 = vmatpush.bf16.msra.mxu0 %v153
    %169 = vmatpush.bf16.msra.mxu0 %v152
    %170 = vmatpush.bf16.msra.mxu0 %v151
    %171 = vmatpush.bf16.msra.mxu0 %v150
    %172 = vmatpush.bf16.msra.mxu0 %v149
    %173 = vmatmul.bf16.gmra.mxu0 %v101
    %v174 = vpop.f32.mrf.mxu0
    %v175 = vadd.f32 0.0, %v174
    %v176 = vpop.f32.mrf.mxu0
    %v177 = vadd.f32 0.0, %v176
    %178 = vmatmul.bf16.gmra.mxu0 %v102
    %v179 = vpop.f32.mrf.mxu0
    %v180 = vadd.f32 0.0, %v179
    %v181 = vpop.f32.mrf.mxu0
    %v182 = vadd.f32 0.0, %v181
    %183 = vmatmul.bf16.gmra.mxu0 %v103
    %v184 = vpop.f32.mrf.mxu0
    %v185 = vadd.f32 0.0, %v184
    %v186 = vpop.f32.mrf.mxu0
    %v187 = vadd.f32 0.0, %v186
    %188 = vmatmul.bf16.gmra.mxu0 %v104
    %v189 = vpop.f32.mrf.mxu0
    %v190 = vadd.f32 0.0, %v189
    %v191 = vpop.f32.mrf.mxu0
    %v192 = vadd.f32 0.0, %v191
    %193 = vmatmul.bf16.gmra.mxu0 %v105
    %v194 = vpop.f32.mrf.mxu0
    %v195 = vadd.f32 0.0, %v194
    %v196 = vpop.f32.mrf.mxu0
    %v197 = vadd.f32 0.0, %v196
    %198 = vmatmul.bf16.gmra.mxu0 %v106
    %v199 = vpop.f32.mrf.mxu0
    %v200 = vadd.f32 0.0, %v199
    %v201 = vpop.f32.mrf.mxu0
    %v202 = vadd.f32 0.0, %v201
    %203 = vmatmul.bf16.gmra.mxu0 %v107
    %v204 = vpop.f32.mrf.mxu0
    %v205 = vadd.f32 0.0, %v204
    %v206 = vpop.f32.mrf.mxu0
    %v207 = vadd.f32 0.0, %v206
    %208 = vmatmul.bf16.gmra.mxu0 %v108
    %v209 = vpop.f32.mrf.mxu0
    %v210 = vadd.f32 0.0, %v209
    %v211 = vpop.f32.mrf.mxu0
    %v212 = vadd.f32 0.0, %v211
    %213 = vdwg.mxu0
    %v214 = vld [vmem:[%s1] sm:$0xff]
    %v215 = vld [vmem:[%s1 + $0x8] sm:$0xff]
    %v216 = vld [vmem:[%s1 + $0x10] sm:$0xff]
    %v217 = vld [vmem:[%s1 + $0x18] sm:$0xff]
    %v218 = vld [vmem:[%s1 + $0x20] sm:$0xff]
    %v219 = vld [vmem:[%s1 + $0x28] sm:$0xff]
    %v220 = vld [vmem:[%s1 + $0x30] sm:$0xff]
    %v221 = vld [vmem:[%s1 + $0x38] sm:$0xff]
    %v222 = vld [vmem:[%s1 + $0x40] sm:$0xff]
    %v223 = vld [vmem:[%s1 + $0x48] sm:$0xff]
    %v224 = vld [vmem:[%s1 + $0x50] sm:$0xff]
    %v225 = vld [vmem:[%s1 + $0x58] sm:$0xff]
    %v226 = vld [vmem:[%s1 + $0x60] sm:$0xff]
    %v227 = vld [vmem:[%s1 + $0x68] sm:$0xff]
    %v228 = vld [vmem:[%s1 + $0x70] sm:$0xff]
    %v229 = vld [vmem:[%s1 + $0x78] sm:$0xff]
    %231 = vset.pattern.permute.xlu0 0
    %232 = vperm.xlu0 %231, %v214
    %v233 = vpop.permute.xlu0 %232
    %236 = vset.pattern.permute.xlu0 0
    %237 = vperm.xlu0 %236, %v215
    %v238 = vpop.permute.xlu0 %237
    %241 = vset.pattern.permute.xlu0 0
    %242 = vperm.xlu0 %241, %v216
    %v243 = vpop.permute.xlu0 %242
    %246 = vset.pattern.permute.xlu0 0
    %247 = vperm.xlu0 %246, %v217
    %v248 = vpop.permute.xlu0 %247
    %251 = vset.pattern.permute.xlu0 0
    %252 = vperm.xlu0 %251, %v218
    %v253 = vpop.permute.xlu0 %252
    %256 = vset.pattern.permute.xlu0 0
    %257 = vperm.xlu0 %256, %v219
    %v258 = vpop.permute.xlu0 %257
    %261 = vset.pattern.permute.xlu0 0
    %262 = vperm.xlu0 %261, %v220
    %v263 = vpop.permute.xlu0 %262
    %266 = vset.pattern.permute.xlu0 0
    %267 = vperm.xlu0 %266, %v221
    %v268 = vpop.permute.xlu0 %267
    %271 = vset.pattern.permute.xlu0 0
    %272 = vperm.xlu0 %271, %v222
    %v273 = vpop.permute.xlu0 %272
    %276 = vset.pattern.permute.xlu0 0
    %277 = vperm.xlu0 %276, %v223
    %v278 = vpop.permute.xlu0 %277
    %281 = vset.pattern.permute.xlu0 0
    %282 = vperm.xlu0 %281, %v224
    %v283 = vpop.permute.xlu0 %282
    %286 = vset.pattern.permute.xlu0 0
    %287 = vperm.xlu0 %286, %v225
    %v288 = vpop.permute.xlu0 %287
    %291 = vset.pattern.permute.xlu0 0
    %292 = vperm.xlu0 %291, %v226
    %v293 = vpop.permute.xlu0 %292
    %296 = vset.pattern.permute.xlu0 0
    %297 = vperm.xlu0 %296, %v227
    %v298 = vpop.permute.xlu0 %297
    %301 = vset.pattern.permute.xlu0 0
    %302 = vperm.xlu0 %301, %v228
    %v303 = vpop.permute.xlu0 %302
    %306 = vset.pattern.permute.xlu0 0
    %307 = vperm.xlu0 %306, %v229
    %v308 = vpop.permute.xlu0 %307
    %v310 = vmul.f32 %v175, %v233
    %v311 = vmul.f32 %v177, %v238
    %v312 = vmul.f32 %v180, %v243
    %v313 = vmul.f32 %v182, %v248
    %v314 = vmul.f32 %v185, %v253
    %v315 = vmul.f32 %v187, %v258
    %v316 = vmul.f32 %v190, %v263
    %v317 = vmul.f32 %v192, %v268
    %v318 = vmul.f32 %v195, %v273
    %v319 = vmul.f32 %v197, %v278
    %v320 = vmul.f32 %v200, %v283
    %v321 = vmul.f32 %v202, %v288
    %v322 = vmul.f32 %v205, %v293
    %v323 = vmul.f32 %v207, %v298
    %v324 = vmul.f32 %v210, %v303
    %v325 = vmul.f32 %v212, %v308
    %v326 = vld [vmem:[%s3] sm:$0x1]
    %v328 = vperm.slane %v326, 0
    %v330 = vadd.f32 %v310, %v328
    %v331 = vadd.f32 %v311, %v328
    %v332 = vadd.f32 %v312, %v328
    %v333 = vadd.f32 %v313, %v328
    %v334 = vadd.f32 %v314, %v328
    %v335 = vadd.f32 %v315, %v328
    %v336 = vadd.f32 %v316, %v328
    %v337 = vadd.f32 %v317, %v328
    %v338 = vadd.f32 %v318, %v328
    %v339 = vadd.f32 %v319, %v328
    %v340 = vadd.f32 %v320, %v328
    %v341 = vadd.f32 %v321, %v328
    %v342 = vadd.f32 %v322, %v328
    %v343 = vadd.f32 %v323, %v328
    %v344 = vadd.f32 %v324, %v328
    %v345 = vadd.f32 %v325, %v328
    %v346 = vmax.f32 %v330, 0.0
    %v347 = vmax.f32 %v331, 0.0
    %v348 = vmax.f32 %v332, 0.0
    %v349 = vmax.f32 %v333, 0.0
    %v350 = vmax.f32 %v334, 0.0
    %v351 = vmax.f32 %v335, 0.0
    %v352 = vmax.f32 %v336, 0.0
    %v353 = vmax.f32 %v337, 0.0
    %v354 = vmax.f32 %v338, 0.0
    %v355 = vmax.f32 %v339, 0.0
    %v356 = vmax.f32 %v340, 0.0
    %v357 = vmax.f32 %v341, 0.0
    %v358 = vmax.f32 %v342, 0.0
    %v359 = vmax.f32 %v343, 0.0
    %v360 = vmax.f32 %v344, 0.0
    %v361 = vmax.f32 %v345, 0.0
    %v362 = vpack.c.bf16 %v347, %v346
    %v363 = vpack.c.bf16 %v349, %v348
    %v364 = vpack.c.bf16 %v351, %v350
    %v365 = vpack.c.bf16 %v353, %v352
    %v366 = vpack.c.bf16 %v355, %v354
    %v367 = vpack.c.bf16 %v357, %v356
    %v368 = vpack.c.bf16 %v359, %v358
    %v369 = vpack.c.bf16 %v361, %v360
    %v370 = vld [vmem:[#allocation2] sm:$0xf]
    %v371 = vld [vmem:[#allocation2 + $0x4] sm:$0xf]
    %v372 = vld [vmem:[#allocation2 + $0x8] sm:$0xf]
    %v373 = vld [vmem:[#allocation2 + $0xc] sm:$0xf]
    %v374 = vld [vmem:[#allocation2 + $0x10] sm:$0xf]
    %v375 = vld [vmem:[#allocation2 + $0x14] sm:$0xf]
    %v376 = vld [vmem:[#allocation2 + $0x18] sm:$0xf]
    %v377 = vld [vmem:[#allocation2 + $0x1c] sm:$0xf]
    %v378 = vld [vmem:[#allocation2 + $0x20] sm:$0xf]
    %v379 = vld [vmem:[#allocation2 + $0x24] sm:$0xf]
    %v380 = vld [vmem:[#allocation2 + $0x28] sm:$0xf]
    %v381 = vld [vmem:[#allocation2 + $0x2c] sm:$0xf]
    %v382 = vld [vmem:[#allocation2 + $0x30] sm:$0xf]
    %v383 = vld [vmem:[#allocation2 + $0x34] sm:$0xf]
    %v384 = vld [vmem:[#allocation2 + $0x38] sm:$0xf]
    %v385 = vld [vmem:[#allocation2 + $0x3c] sm:$0xf]
    %v402 = vunpack.c.l.b16 %v370
    %v403 = vunpack.c.l.b16 %v371
    %v404 = vunpack.c.l.b16 %v372
    %v405 = vunpack.c.l.b16 %v373
    %v406 = vunpack.c.l.b16 %v374
    %v407 = vunpack.c.l.b16 %v375
    %v408 = vunpack.c.l.b16 %v376
    %v409 = vunpack.c.l.b16 %v377
    %v410 = vunpack.c.l.b16 %v378
    %v411 = vunpack.c.l.b16 %v379
    %v412 = vunpack.c.l.b16 %v380
    %v413 = vunpack.c.l.b16 %v381
    %v414 = vunpack.c.l.b16 %v382
    %v415 = vunpack.c.l.b16 %v383
    %v416 = vunpack.c.l.b16 %v384
    %v417 = vunpack.c.l.b16 %v385
    %v418 = vpack.c.b16 %v403, %v402
    %v419 = vpack.c.b16 %v405, %v404
    %v420 = vpack.c.b16 %v407, %v406
    %v421 = vpack.c.b16 %v409, %v408
    %v422 = vpack.c.b16 %v411, %v410
    %v423 = vpack.c.b16 %v413, %v412
    %v424 = vpack.c.b16 %v415, %v414
    %v425 = vpack.c.b16 %v417, %v416
    %434 = vmatpush.bf16.msra.mxu0 %v425
    %435 = vmatpush.bf16.msra.mxu0 %v424
    %436 = vmatpush.bf16.msra.mxu0 %v423
    %437 = vmatpush.bf16.msra.mxu0 %v422
    %438 = vmatpush.bf16.msra.mxu0 %v421
    %439 = vmatpush.bf16.msra.mxu0 %v420
    %440 = vmatpush.bf16.msra.mxu0 %v419
    %441 = vmatpush.bf16.msra.mxu0 %v418
    %442 = vmatmul.bf16.gmra.mxu0 %v362
    %v443 = vpop.f32.mrf.mxu0
    %v444 = vadd.f32 0.0, %v443
    %v445 = vpop.f32.mrf.mxu0
    %v446 = vadd.f32 0.0, %v445
    %447 = vmatmul.bf16.gmra.mxu0 %v363
    %v448 = vpop.f32.mrf.mxu0
    %v449 = vadd.f32 0.0, %v448
    %v450 = vpop.f32.mrf.mxu0
    %v451 = vadd.f32 0.0, %v450
    %452 = vmatmul.bf16.gmra.mxu0 %v364
    %v453 = vpop.f32.mrf.mxu0
    %v454 = vadd.f32 0.0, %v453
    %v455 = vpop.f32.mrf.mxu0
    %v456 = vadd.f32 0.0, %v455
    %457 = vmatmul.bf16.gmra.mxu0 %v365
    %v458 = vpop.f32.mrf.mxu0
    %v459 = vadd.f32 0.0, %v458
    %v460 = vpop.f32.mrf.mxu0
    %v461 = vadd.f32 0.0, %v460
    %462 = vmatmul.bf16.gmra.mxu0 %v366
    %v463 = vpop.f32.mrf.mxu0
    %v464 = vadd.f32 0.0, %v463
    %v465 = vpop.f32.mrf.mxu0
    %v466 = vadd.f32 0.0, %v465
    %467 = vmatmul.bf16.gmra.mxu0 %v367
    %v468 = vpop.f32.mrf.mxu0
    %v469 = vadd.f32 0.0, %v468
    %v470 = vpop.f32.mrf.mxu0
    %v471 = vadd.f32 0.0, %v470
    %472 = vmatmul.bf16.gmra.mxu0 %v368
    %v473 = vpop.f32.mrf.mxu0
    %v474 = vadd.f32 0.0, %v473
    %v475 = vpop.f32.mrf.mxu0
    %v476 = vadd.f32 0.0, %v475
    %477 = vmatmul.bf16.gmra.mxu0 %v369
    %v478 = vpop.f32.mrf.mxu0
    %v479 = vadd.f32 0.0, %v478
    %v480 = vpop.f32.mrf.mxu0
    %v481 = vadd.f32 0.0, %v480
    %482 = vdwg.mxu0
    %v483 = vpack.c.bf16 %v444, %v444
    %v484 = vpack.c.bf16 %v446, %v446
    %v485 = vpack.c.bf16 %v449, %v449
    %v486 = vpack.c.bf16 %v451, %v451
    %v487 = vpack.c.bf16 %v454, %v454
    %v488 = vpack.c.bf16 %v456, %v456
    %v489 = vpack.c.bf16 %v459, %v459
    %v490 = vpack.c.bf16 %v461, %v461
    %v491 = vpack.c.bf16 %v464, %v464
    %v492 = vpack.c.bf16 %v466, %v466
    %v493 = vpack.c.bf16 %v469, %v469
    %v494 = vpack.c.bf16 %v471, %v471
    %v495 = vpack.c.bf16 %v474, %v474
    %v496 = vpack.c.bf16 %v476, %v476
    %v497 = vpack.c.bf16 %v479, %v479
    %v498 = vpack.c.bf16 %v481, %v481
    %499 = vst [vmem:[#allocation5] sm:$0xf] %v483
    %500 = vst [vmem:[#allocation5 + $0x4] sm:$0xf] %v484
    %501 = vst [vmem:[#allocation5 + $0x8] sm:$0xf] %v485
    %502 = vst [vmem:[#allocation5 + $0xc] sm:$0xf] %v486
    %503 = vst [vmem:[#allocation5 + $0x10] sm:$0xf] %v487
    %504 = vst [vmem:[#allocation5 + $0x14] sm:$0xf] %v488
    %505 = vst [vmem:[#allocation5 + $0x18] sm:$0xf] %v489
    %506 = vst [vmem:[#allocation5 + $0x1c] sm:$0xf] %v490
    %507 = vst [vmem:[#allocation5 + $0x20] sm:$0xf] %v491
    %508 = vst [vmem:[#allocation5 + $0x24] sm:$0xf] %v492
    %509 = vst [vmem:[#allocation5 + $0x28] sm:$0xf] %v493
    %510 = vst [vmem:[#allocation5 + $0x2c] sm:$0xf] %v494
    %511 = vst [vmem:[#allocation5 + $0x30] sm:$0xf] %v495
    %512 = vst [vmem:[#allocation5 + $0x34] sm:$0xf] %v496
    %513 = vst [vmem:[#allocation5 + $0x38] sm:$0xf] %v497
    %514 = vst [vmem:[#allocation5 + $0x3c] sm:$0xf] %v498
    // Predicated region
    $region26: #{tpu_custom_call.1} parent=1 // pred_check
      _
    $region27: #{tpu_custom_call.1} parent=1 // pred_check_branch
      %516 = sbr.rel (0) target = $region29
    $region28: #{tpu_custom_call.1} parent=1 // pred_region
      %518 = vsyncadd [#allocation4], 0
      %s519 = sshll.u32 [#allocation5], 4
      %s520 = int_to_ptr.vmem [resolvable:$true] %s519
      %s521 = sshll.u32 %s5, 4
      %s522 = int_to_ptr.hbm [resolvable:$true] %s521
      %527 = dma.vmem_to_hbm [thread:$0]  %s520, 1024, %s522, [#allocation4], 64, 64, 4
    $region29: #{tpu_custom_call.1} parent=1 // pred_fallthru
      _
    // Predicated region
    $region30: #{tpu_custom_call.1} parent=1 // pred_check
      _
    $region31: #{tpu_custom_call.1} parent=1 // pred_check_branch
      %529 = sbr.rel (0) target = $region33
    $region32: #{tpu_custom_call.1} parent=1 // pred_region
      %531 = dma.done [#allocation4], 1024
    $region33: #{tpu_custom_call.1} parent=1 // pred_fallthru
      _
    %532 = vsyncpa [#allocation3], 1
    %533 = vsyncpa [#allocation4], 1

</llo_original>
